<compile_context>
chip_gen: v5e
topology: v5e:2x2
jax: 0.10.0
libtpu: 0.0.40
codegen_flags: <defaults>
</compile_context>

<pallas_src>
import functools

import jax
import jax.numpy as jnp
from jax import lax
from jax.experimental import pallas as pl
from jax.experimental.pallas import tpu as pltpu


def patch_merging_kernel(x_ref, w1_ref, b1_ref, w2_ref, b2_ref,
                         sew1t_ref, seb1_ref, sew2_ref, seb2_ref,
                         w3_ref, b3_ref, o_ref, *, wo, hw, fused_conv1):
    w1 = w1_ref[...]                  # (hid, C)   bf16
    b1 = b1_ref[...]                  # (hid, 1)   f32

    # --- conv1 (1x1, BN folded) + ReLU --------------------------------------
    if fused_conv1:
        # One MXU pass over all 4 phases: x is (C, 4*HW) with lane index
        # p*HW + i*Wo + j, HW % 128 == 0 so the phase slices are lane-aligned.
        y1 = jnp.maximum(
            jnp.dot(w1, x_ref[0], preferred_element_type=jnp.float32) + b1, 0.0)
        p_ee = y1[:, 0 * hw:1 * hw]
        p_eo = y1[:, 1 * hw:2 * hw]
        p_oe = y1[:, 2 * hw:3 * hw]
        p_oo = y1[:, 3 * hw:4 * hw]
    else:
        x = x_ref[0]                  # (4, C, HW) bf16, phase p = 2*a + b

        def pw(p):
            return jnp.maximum(
                jnp.dot(w1, x[p], preferred_element_type=jnp.float32) + b1, 0.0)

        p_ee, p_eo, p_oe, p_oo = pw(0), pw(1), pw(2), pw(3)   # (hid, HW) f32

    # --- boundary masks, generated in-kernel (VPU ops only) -----------------
    # row = floor((lane + 0.5)/Wo) is exact for any realistic HW: the 0.5/Wo
    # margin dwarfs f32 rounding of the quotient for lane < ~5e6.
    lane = lax.broadcasted_iota(jnp.int32, (1, hw), 1).astype(jnp.float32)
    row = jnp.floor((lane + 0.5) * (1.0 / wo))
    jm = (lane > row * wo).astype(jnp.float32)    # 1.0 where output col j > 0
    im = (row > 0.5).astype(jnp.float32)          # 1.0 where output row i > 0

    # --- depthwise 3x3, stride 2, pad 1 (BN folded) + ReLU -------------------
    # Output (i, j) uses y1[2i+di-1, 2j+dj-1]; on the phase images this is a
    # per-channel scaling plus shifts by one output row/col (lane rolls on the
    # flattened i*Wo + j axis, boundary rows/cols zeroed by the masks).
    w2 = w2_ref[...]                  # (hid, 9), index 3*di + dj

    def tap(di, dj):
        k = 3 * di + dj
        return w2[:, k:k + 1]         # (hid, 1), broadcast across lanes

    acc = (tap(1, 1) * p_ee + tap(1, 2) * p_eo +
           tap(2, 1) * p_oe + tap(2, 2) * p_oo)
    acc = acc + jm * pltpu.roll(tap(1, 0) * p_eo + tap(2, 0) * p_oo, 1, 1)
    acc = acc + im * pltpu.roll(tap(0, 1) * p_oe + tap(0, 2) * p_oo, wo, 1)
    acc = acc + (im * jm) * pltpu.roll(tap(0, 0) * p_oo, wo + 1, 1)
    y2 = jnp.maximum(acc + b2_ref[...], 0.0)      # (hid, HW) f32

    # --- SqueezeExcitation, done on the VPU (no N=1 MXU matmuls) -------------
    s = jnp.mean(y2, axis=1, keepdims=True)                          # (hid, 1)
    z = jnp.maximum(
        jnp.sum(sew1t_ref[...] * s, axis=0, keepdims=True)
        + seb1_ref[...], 0.0)                                        # (1, hid//4)
    g = jax.nn.sigmoid(
        jnp.sum(sew2_ref[...] * z, axis=1, keepdims=True)
        + seb2_ref[...])                                             # (hid, 1)

    # --- conv3 (1x1, BN folded); gate is a cheap lane-broadcast rescale ------
    y2g = (y2 * g).astype(jnp.bfloat16)
    out = (jnp.dot(w3_ref[...], y2g, preferred_element_type=jnp.float32)
           + b3_ref[...])
    o_ref[0] = out.astype(o_ref.dtype)            # (od, HW): lane-dense NCHW


@functools.partial(jax.jit, static_argnames=("fuse_conv1",))
def patch_merging(x_nchw, p, fuse_conv1=None):
    B, C, H, W = x_nchw.shape
    assert H % 2 == 0 and W % 2 == 0, "PatchMerging kernel assumes even H, W"
    hid = p["w1"].shape[0]
    od = p["w3"].shape[0]
    Ho, Wo = H // 2, W // 2
    HW = Ho * Wo
    if fuse_conv1 is None:
        fuse_conv1 = (HW % 128 == 0)   # fused path needs lane-aligned slices

    # Keep the input bf16 *through* the space-to-depth pass (half the HBM
    # bytes) — bf16 is also the conv1 MXU operand dtype.
    x = x_nchw.astype(jnp.bfloat16)
    if fuse_conv1:
        # (B, C, 4*HW): lane index = (2a+b)*HW + i*Wo + j for pixel (2i+a, 2j+b)
        xp = (x.reshape(B, C, Ho, 2, Wo, 2)
              .transpose(0, 1, 3, 5, 2, 4)
              .reshape(B, C, 4 * HW))
        x_spec = pl.BlockSpec((1, C, 4 * HW), lambda b: (b, 0, 0))
    else:
        # (B, 4, C, HW): phase p = 2a+b, inner index i*Wo + j
        xp = (x.reshape(B, C, Ho, 2, Wo, 2)
              .transpose(0, 3, 5, 1, 2, 4)
              .reshape(B, 4, C, HW))
        x_spec = pl.BlockSpec((1, 4, C, HW), lambda b: (b, 0, 0, 0))

    w1 = p["w1"].astype(jnp.bfloat16)
    w3 = p["w3"].astype(jnp.bfloat16)

    def rep(shape):
        return pl.BlockSpec(shape, lambda b, n=len(shape): (0,) * n)

    kernel = functools.partial(patch_merging_kernel, wo=Wo, hw=HW,
                               fused_conv1=fuse_conv1)

    out = pl.pallas_call(
        kernel,
        out_shape=jax.ShapeDtypeStruct((B, od, HW), jnp.float32),
        grid=(B,),
        in_specs=[
            x_spec,
            rep((hid, C)), rep((hid, 1)),
            rep((hid, 9)), rep((hid, 1)),
            rep((hid, hid // 4)), rep((1, hid // 4)),
            rep((hid, hid // 4)), rep((hid, 1)),
            rep((od, hid)), rep((od, 1)),
        ],
        out_specs=pl.BlockSpec((1, od, HW), lambda b: (b, 0, 0)),
        compiler_params=pltpu.CompilerParams(
            dimension_semantics=("parallel",)),
    )(xp, w1, p["b1"], p["w2"], p["b2"],
      p["sew1t"], p["seb1"], p["sew2"], p["seb2"], w3, p["b3"])

    # Output is already NCHW (channel-major, spatial on lanes): free reshape.
    return out.reshape(B, od, Ho, Wo)


def init_params(key, dim, out_dim):
    hid = dim * 4
    eps = 1e-5
    ks = jax.random.split(key, 10)

    def bn_fold(k, n):
        # Conv2dNorm init: gamma = bn_weight_init (1.0), beta = 0; synthetic stats.
        gamma = jnp.ones((n,), jnp.float32)
        beta = jnp.zeros((n,), jnp.float32)
        k1, k2 = jax.random.split(k)
        mean = 0.1 * jax.random.normal(k1, (n,), jnp.float32)
        var = 1.0 + 0.1 * jax.random.uniform(k2, (n,), jnp.float32)
        scale = gamma / jnp.sqrt(var + eps)
        shift = beta - mean * scale
        return scale, shift

    # conv1: Conv2d(dim, hid, 1), no bias, + BN  -> channel-major (hid, dim)
    w1 = 0.1 * jax.random.normal(ks[0], (hid, dim), jnp.float32)
    s1, t1 = bn_fold(ks[1], hid)
    w1_eff, b1_eff = w1 * s1[:, None], t1[:, None]

    # conv2: depthwise Conv2d(hid, hid, 3, s=2, p=1, groups=hid), + BN -> (hid, 9)
    w2 = 0.1 * jax.random.normal(ks[2], (hid, 3, 3), jnp.float32)
    s2, t2 = bn_fold(ks[3], hid)
    w2_eff = (w2 * s2[:, None, None]).reshape(hid, 9)
    b2_eff = t2[:, None]

    # SqueezeExcitation: fc1 Conv2d(hid, hid//4, 1)+bias; fc2 Conv2d(hid//4, hid, 1)+bias
    sew1 = 0.1 * jax.random.normal(ks[4], (hid // 4, hid), jnp.float32)
    seb1 = 0.1 * jax.random.normal(ks[5], (hid // 4,), jnp.float32)
    sew2 = 0.1 * jax.random.normal(ks[6], (hid, hid // 4), jnp.float32)
    seb2 = 0.1 * jax.random.normal(ks[7], (hid,), jnp.float32)

    # conv3: Conv2d(hid, out_dim, 1), no bias, + BN -> (out_dim, hid)
    w3 = 0.1 * jax.random.normal(ks[8], (out_dim, hid), jnp.float32)
    s3, t3 = bn_fold(ks[9], out_dim)
    w3_eff, b3_eff = w3 * s3[:, None], t3[:, None]

    return dict(w1=w1_eff, b1=b1_eff, w2=w2_eff, b2=b2_eff,
                sew1t=sew1.T,           # fc1 weight pre-transposed for the VPU path
                seb1=seb1[None, :],     # (1, hid//4) row
                sew2=sew2, seb2=seb2[:, None],
                w3=w3_eff, b3=b3_eff)


def ref_forward(x_nchw, p):
    """Pure-JAX NCHW reference with the same bf16 rounding at MXU boundaries."""
    f32 = jnp.float32
    B, C, H, W = x_nchw.shape
    Ho, Wo = H // 2, W // 2
    hid = p["w1"].shape[0]

    xb = x_nchw.astype(jnp.bfloat16)
    w1b = p["w1"].astype(jnp.bfloat16)
    w3b = p["w3"].astype(jnp.bfloat16)

    y1 = jnp.maximum(
        jnp.einsum("bchw,kc->bkhw", xb, w1b, preferred_element_type=f32)
        + p["b1"].reshape(1, hid, 1, 1), 0.0)
    y1p = jnp.pad(y1, ((0, 0), (0, 0), (1, 1), (1, 1)))
    w2 = p["w2"].reshape(hid, 3, 3)
    acc = jnp.zeros((B, hid, Ho, Wo), f32)
    for di in range(3):
        for dj in range(3):
            acc = acc + (y1p[:, :, di:di + 2 * Ho:2, dj:dj + 2 * Wo:2]
                         * w2[None, :, di, dj, None, None])
    y2 = jnp.maximum(acc + p["b2"].reshape(1, hid, 1, 1), 0.0)

    s = jnp.mean(y2, axis=(2, 3), keepdims=True)
    z = jnp.maximum(jnp.einsum("bkxy,km->bmxy", s, p["sew1t"])
                    + p["seb1"].reshape(1, -1, 1, 1), 0.0)
    g = jax.nn.sigmoid(jnp.einsum("bmxy,km->bkxy", z, p["sew2"])
                       + p["seb2"].reshape(1, hid, 1, 1))

    y2g = (y2 * g).astype(jnp.bfloat16)
    out = (jnp.einsum("bkhw,ok->bohw", y2g, w3b, preferred_element_type=f32)
           + p["b3"].reshape(1, -1, 1, 1))
    return out


if __name__ == "__main__":
    key = jax.random.PRNGKey(0)
    kx, kp = jax.random.split(key)

    B, dim, H, W = 2, 4, 32, 32      # dim=4 -> hidden_dim=16; Ho*Wo = 256
    out_dim = 8
    x = jax.random.normal(kx, (B, dim, H, W), jnp.float32)   # NCHW, like PyTorch
    params = init_params(kp, dim, out_dim)

    ref = ref_forward(x, params)

    # Path 1: fused single-dot conv1 (HW = 256 is a multiple of 128).
    out_fused = jax.block_until_ready(patch_merging(x, params))
    # Path 2: per-phase conv1 dots (explicitly exercised for coverage).
    out_phase = jax.block_until_ready(patch_merging(x, params, fuse_conv1=False))

    for out in (out_fused, out_phase):
        assert out.shape == (B, out_dim, H // 2, W // 2), out.shape
        err = float(jnp.max(jnp.abs(out - ref)))
        assert jnp.allclose(out, ref, atol=5e-3, rtol=5e-3), err
    print("KERNEL_OK")
</pallas_src>

<mosaic_0001>
module attributes {stable_mosaic.version = 11 : i64} {
  func.func @patch_merging_kernel(%arg0: i32, %arg1: memref<1x4x1024xbf16, #tpu.memory_space<vmem>>, %arg2: memref<16x4xbf16, #tpu.memory_space<vmem>>, %arg3: memref<16x1xf32, #tpu.memory_space<vmem>>, %arg4: memref<16x9xf32, #tpu.memory_space<vmem>>, %arg5: memref<16x1xf32, #tpu.memory_space<vmem>>, %arg6: memref<16x4xf32, #tpu.memory_space<vmem>>, %arg7: memref<1x4xf32, #tpu.memory_space<vmem>>, %arg8: memref<16x4xf32, #tpu.memory_space<vmem>>, %arg9: memref<16x1xf32, #tpu.memory_space<vmem>>, %arg10: memref<8x16xbf16, #tpu.memory_space<vmem>>, %arg11: memref<8x1xf32, #tpu.memory_space<vmem>>, %arg12: memref<1x8x256xf32, #tpu.memory_space<vmem>>) attributes {dimension_semantics = [#tpu.dimension_semantics<parallel>], iteration_bounds = array<i64: 2>, scalar_prefetch = 0 : i64, scratch_operands = 0 : i64, tpu.core_type = #tpu.core_type<tc>, window_params = [{transform_indices = @transform_0, window_bounds = array<i64: 1, 4, 1024>}, {pipeline_mode = #tpu.pipeline_mode<synchronous>, transform_indices = @transform_1, window_bounds = array<i64: 16, 4>}, {pipeline_mode = #tpu.pipeline_mode<synchronous>, transform_indices = @transform_2, window_bounds = array<i64: 16, 1>}, {pipeline_mode = #tpu.pipeline_mode<synchronous>, transform_indices = @transform_3, window_bounds = array<i64: 16, 9>}, {pipeline_mode = #tpu.pipeline_mode<synchronous>, transform_indices = @transform_4, window_bounds = array<i64: 16, 1>}, {pipeline_mode = #tpu.pipeline_mode<synchronous>, transform_indices = @transform_5, window_bounds = array<i64: 16, 4>}, {pipeline_mode = #tpu.pipeline_mode<synchronous>, transform_indices = @transform_6, window_bounds = array<i64: 1, 4>}, {pipeline_mode = #tpu.pipeline_mode<synchronous>, transform_indices = @transform_7, window_bounds = array<i64: 16, 4>}, {pipeline_mode = #tpu.pipeline_mode<synchronous>, transform_indices = @transform_8, window_bounds = array<i64: 16, 1>}, {pipeline_mode = #tpu.pipeline_mode<synchronous>, transform_indices = @transform_9, window_bounds = array<i64: 8, 16>}, {pipeline_mode = #tpu.pipeline_mode<synchronous>, transform_indices = @transform_10, window_bounds = array<i64: 8, 1>}, {transform_indices = @transform_11, window_bounds = array<i64: 1, 8, 256>}]} {
    %c0 = arith.constant 0 : index
    %c0_0 = arith.constant 0 : index
    %0 = vector.load %arg2[%c0, %c0_0] : memref<16x4xbf16, #tpu.memory_space<vmem>>, vector<16x4xbf16>
    %c0_1 = arith.constant 0 : index
    %c0_2 = arith.constant 0 : index
    %1 = vector.load %arg3[%c0_1, %c0_2] : memref<16x1xf32, #tpu.memory_space<vmem>>, vector<16x1xf32>
    %c0_3 = arith.constant 0 : index
    %c0_4 = arith.constant 0 : index
    %c0_5 = arith.constant 0 : index
    %2 = vector.load %arg1[%c0_3, %c0_4, %c0_5] : memref<1x4x1024xbf16, #tpu.memory_space<vmem>>, vector<1x4x1024xbf16>
    %3 = vector.shape_cast %2 : vector<1x4x1024xbf16> to vector<4x1024xbf16>
    %cst = arith.constant dense<0.000000e+00> : vector<16x1024xf32>
    %4 = tpu.matmul %0, %3, %cst {dimension_numbers = #tpu.dot_dimension_numbers<[1], [0], [0], [1], [0, 0, 1, 1], [], []>} : vector<16x4xbf16>, vector<4x1024xbf16>, vector<16x1024xf32> -> vector<16x1024xf32>
    %5 = vector.broadcast %1 : vector<16x1xf32> to vector<16x1024xf32>
    %6 = arith.addf %4, %5 : vector<16x1024xf32>
    %cst_6 = arith.constant 0.000000e+00 : f32
    %7 = vector.broadcast %cst_6 : f32 to vector<16x1024xf32>
    %8 = arith.maximumf %6, %7 : vector<16x1024xf32>
    %9 = vector.extract_strided_slice %8 {offsets = [0, 0], sizes = [16, 256], strides = [1, 1]} : vector<16x1024xf32> to vector<16x256xf32>
    %10 = vector.extract_strided_slice %8 {offsets = [0, 256], sizes = [16, 256], strides = [1, 1]} : vector<16x1024xf32> to vector<16x256xf32>
    %11 = vector.extract_strided_slice %8 {offsets = [0, 512], sizes = [16, 256], strides = [1, 1]} : vector<16x1024xf32> to vector<16x256xf32>
    %12 = vector.extract_strided_slice %8 {offsets = [0, 768], sizes = [16, 256], strides = [1, 1]} : vector<16x1024xf32> to vector<16x256xf32>
    %13 = tpu.iota {dimensions = array<i32: 1>} : vector<1x256xi32>
    %14 = arith.sitofp %13 : vector<1x256xi32> to vector<1x256xf32>
    %cst_7 = arith.constant 5.000000e-01 : f32
    %15 = vector.broadcast %cst_7 : f32 to vector<1x256xf32>
    %16 = arith.addf %14, %15 : vector<1x256xf32>
    %cst_8 = arith.constant 6.250000e-02 : f32
    %17 = vector.broadcast %cst_8 : f32 to vector<1x256xf32>
    %18 = arith.mulf %16, %17 : vector<1x256xf32>
    %19 = math.floor %18 : vector<1x256xf32>
    %cst_9 = arith.constant 1.600000e+01 : f32
    %20 = vector.broadcast %cst_9 : f32 to vector<1x256xf32>
    %21 = arith.mulf %19, %20 : vector<1x256xf32>
    %22 = arith.cmpf ogt, %14, %21 : vector<1x256xf32>
    %23 = arith.extui %22 : vector<1x256xi1> to vector<1x256xi32>
    %24 = arith.sitofp %23 : vector<1x256xi32> to vector<1x256xf32>
    %cst_10 = arith.constant 5.000000e-01 : f32
    %25 = vector.broadcast %cst_10 : f32 to vector<1x256xf32>
    %26 = arith.cmpf ogt, %19, %25 : vector<1x256xf32>
    %27 = arith.extui %26 : vector<1x256xi1> to vector<1x256xi32>
    %28 = arith.sitofp %27 : vector<1x256xi32> to vector<1x256xf32>
    %c0_11 = arith.constant 0 : index
    %c0_12 = arith.constant 0 : index
    %29 = vector.load %arg4[%c0_11, %c0_12] : memref<16x9xf32, #tpu.memory_space<vmem>>, vector<16x9xf32>
    %30 = vector.extract_strided_slice %29 {offsets = [0, 4], sizes = [16, 1], strides = [1, 1]} : vector<16x9xf32> to vector<16x1xf32>
    %31 = vector.broadcast %30 : vector<16x1xf32> to vector<16x256xf32>
    %32 = arith.mulf %31, %9 : vector<16x256xf32>
    %33 = vector.extract_strided_slice %29 {offsets = [0, 5], sizes = [16, 1], strides = [1, 1]} : vector<16x9xf32> to vector<16x1xf32>
    %34 = vector.broadcast %33 : vector<16x1xf32> to vector<16x256xf32>
    %35 = arith.mulf %34, %10 : vector<16x256xf32>
    %36 = arith.addf %32, %35 : vector<16x256xf32>
    %37 = vector.extract_strided_slice %29 {offsets = [0, 7], sizes = [16, 1], strides = [1, 1]} : vector<16x9xf32> to vector<16x1xf32>
    %38 = vector.broadcast %37 : vector<16x1xf32> to vector<16x256xf32>
    %39 = arith.mulf %38, %11 : vector<16x256xf32>
    %40 = arith.addf %36, %39 : vector<16x256xf32>
    %41 = vector.extract_strided_slice %29 {offsets = [0, 8], sizes = [16, 1], strides = [1, 1]} : vector<16x9xf32> to vector<16x1xf32>
    %42 = vector.broadcast %41 : vector<16x1xf32> to vector<16x256xf32>
    %43 = arith.mulf %42, %12 : vector<16x256xf32>
    %44 = arith.addf %40, %43 : vector<16x256xf32>
    %45 = vector.extract_strided_slice %29 {offsets = [0, 3], sizes = [16, 1], strides = [1, 1]} : vector<16x9xf32> to vector<16x1xf32>
    %46 = vector.broadcast %45 : vector<16x1xf32> to vector<16x256xf32>
    %47 = arith.mulf %46, %10 : vector<16x256xf32>
    %48 = vector.extract_strided_slice %29 {offsets = [0, 6], sizes = [16, 1], strides = [1, 1]} : vector<16x9xf32> to vector<16x1xf32>
    %49 = vector.broadcast %48 : vector<16x1xf32> to vector<16x256xf32>
    %50 = arith.mulf %49, %12 : vector<16x256xf32>
    %51 = arith.addf %47, %50 : vector<16x256xf32>
    %c1_i32 = arith.constant 1 : i32
    %52 = tpu.dynamic_rotate %51 by %c1_i32 dim 1 : vector<16x256xf32>, i32 -> vector<16x256xf32>
    %53 = vector.broadcast %24 : vector<1x256xf32> to vector<16x256xf32>
    %54 = arith.mulf %53, %52 : vector<16x256xf32>
    %55 = arith.addf %44, %54 : vector<16x256xf32>
    %56 = vector.extract_strided_slice %29 {offsets = [0, 1], sizes = [16, 1], strides = [1, 1]} : vector<16x9xf32> to vector<16x1xf32>
    %57 = vector.broadcast %56 : vector<16x1xf32> to vector<16x256xf32>
    %58 = arith.mulf %57, %11 : vector<16x256xf32>
    %59 = vector.extract_strided_slice %29 {offsets = [0, 2], sizes = [16, 1], strides = [1, 1]} : vector<16x9xf32> to vector<16x1xf32>
    %60 = vector.broadcast %59 : vector<16x1xf32> to vector<16x256xf32>
    %61 = arith.mulf %60, %12 : vector<16x256xf32>
    %62 = arith.addf %58, %61 : vector<16x256xf32>
    %c16_i32 = arith.constant 16 : i32
    %63 = tpu.dynamic_rotate %62 by %c16_i32 dim 1 : vector<16x256xf32>, i32 -> vector<16x256xf32>
    %64 = vector.broadcast %28 : vector<1x256xf32> to vector<16x256xf32>
    %65 = arith.mulf %64, %63 : vector<16x256xf32>
    %66 = arith.addf %55, %65 : vector<16x256xf32>
    %67 = arith.mulf %28, %24 : vector<1x256xf32>
    %68 = vector.extract_strided_slice %29 {offsets = [0, 0], sizes = [16, 1], strides = [1, 1]} : vector<16x9xf32> to vector<16x1xf32>
    %69 = vector.broadcast %68 : vector<16x1xf32> to vector<16x256xf32>
    %70 = arith.mulf %69, %12 : vector<16x256xf32>
    %c17_i32 = arith.constant 17 : i32
    %71 = tpu.dynamic_rotate %70 by %c17_i32 dim 1 : vector<16x256xf32>, i32 -> vector<16x256xf32>
    %72 = vector.broadcast %67 : vector<1x256xf32> to vector<16x256xf32>
    %73 = arith.mulf %72, %71 : vector<16x256xf32>
    %74 = arith.addf %66, %73 : vector<16x256xf32>
    %c0_13 = arith.constant 0 : index
    %c0_14 = arith.constant 0 : index
    %75 = vector.load %arg5[%c0_13, %c0_14] : memref<16x1xf32, #tpu.memory_space<vmem>>, vector<16x1xf32>
    %76 = vector.broadcast %75 : vector<16x1xf32> to vector<16x256xf32>
    %77 = arith.addf %74, %76 : vector<16x256xf32>
    %cst_15 = arith.constant 0.000000e+00 : f32
    %78 = vector.broadcast %cst_15 : f32 to vector<16x256xf32>
    %79 = arith.maximumf %77, %78 : vector<16x256xf32>
    %cst_16 = arith.constant dense<0.000000e+00> : vector<16xf32>
    %80 = vector.multi_reduction <add>, %79, %cst_16 [1] : vector<16x256xf32> to vector<16xf32>
    %81 = vector.shape_cast %80 : vector<16xf32> to vector<16x1xf32>
    %cst_17 = arith.constant 2.560000e+02 : f32
    %82 = vector.broadcast %cst_17 : f32 to vector<16x1xf32>
    %83 = arith.divf %81, %82 : vector<16x1xf32>
    %c0_18 = arith.constant 0 : index
    %c0_19 = arith.constant 0 : index
    %84 = vector.load %arg6[%c0_18, %c0_19] : memref<16x4xf32, #tpu.memory_space<vmem>>, vector<16x4xf32>
    %85 = vector.broadcast %83 : vector<16x1xf32> to vector<16x4xf32>
    %86 = arith.mulf %84, %85 : vector<16x4xf32>
    %cst_20 = arith.constant dense<0.000000e+00> : vector<4xf32>
    %87 = vector.multi_reduction <add>, %86, %cst_20 [0] : vector<16x4xf32> to vector<4xf32>
    %88 = vector.shape_cast %87 : vector<4xf32> to vector<1x4xf32>
    %c0_21 = arith.constant 0 : index
    %c0_22 = arith.constant 0 : index
    %89 = vector.load %arg7[%c0_21, %c0_22] : memref<1x4xf32, #tpu.memory_space<vmem>>, vector<1x4xf32>
    %90 = arith.addf %88, %89 : vector<1x4xf32>
    %cst_23 = arith.constant 0.000000e+00 : f32
    %91 = vector.broadcast %cst_23 : f32 to vector<1x4xf32>
    %92 = arith.maximumf %90, %91 : vector<1x4xf32>
    %c0_24 = arith.constant 0 : index
    %c0_25 = arith.constant 0 : index
    %93 = vector.load %arg8[%c0_24, %c0_25] : memref<16x4xf32, #tpu.memory_space<vmem>>, vector<16x4xf32>
    %94 = vector.broadcast %92 : vector<1x4xf32> to vector<16x4xf32>
    %95 = arith.mulf %93, %94 : vector<16x4xf32>
    %cst_26 = arith.constant dense<0.000000e+00> : vector<16xf32>
    %96 = vector.multi_reduction <add>, %95, %cst_26 [1] : vector<16x4xf32> to vector<16xf32>
    %97 = vector.shape_cast %96 : vector<16xf32> to vector<16x1xf32>
    %c0_27 = arith.constant 0 : index
    %c0_28 = arith.constant 0 : index
    %98 = vector.load %arg9[%c0_27, %c0_28] : memref<16x1xf32, #tpu.memory_space<vmem>>, vector<16x1xf32>
    %99 = arith.addf %97, %98 : vector<16x1xf32>
    %100 = arith.negf %99 : vector<16x1xf32>
    %101 = math.exp %100 : vector<16x1xf32>
    %cst_29 = arith.constant 1.000000e+00 : f32
    %102 = vector.broadcast %cst_29 : f32 to vector<16x1xf32>
    %103 = arith.addf %102, %101 : vector<16x1xf32>
    %104 = arith.divf %102, %103 : vector<16x1xf32>
    %105 = vector.broadcast %104 : vector<16x1xf32> to vector<16x256xf32>
    %106 = arith.mulf %79, %105 : vector<16x256xf32>
    %107 = arith.truncf %106 : vector<16x256xf32> to vector<16x256xbf16>
    %c0_30 = arith.constant 0 : index
    %c0_31 = arith.constant 0 : index
    %108 = vector.load %arg10[%c0_30, %c0_31] : memref<8x16xbf16, #tpu.memory_space<vmem>>, vector<8x16xbf16>
    %cst_32 = arith.constant dense<0.000000e+00> : vector<8x256xf32>
    %109 = tpu.matmul %108, %107, %cst_32 {dimension_numbers = #tpu.dot_dimension_numbers<[1], [0], [0], [1], [0, 0, 1, 1], [], []>} : vector<8x16xbf16>, vector<16x256xbf16>, vector<8x256xf32> -> vector<8x256xf32>
    %c0_33 = arith.constant 0 : index
    %c0_34 = arith.constant 0 : index
    %110 = vector.load %arg11[%c0_33, %c0_34] : memref<8x1xf32, #tpu.memory_space<vmem>>, vector<8x1xf32>
    %111 = vector.broadcast %110 : vector<8x1xf32> to vector<8x256xf32>
    %112 = arith.addf %109, %111 : vector<8x256xf32>
    %c0_35 = arith.constant 0 : index
    %c0_36 = arith.constant 0 : index
    %c0_37 = arith.constant 0 : index
    %113 = vector.load %arg12[%c0_35, %c0_36, %c0_37] : memref<1x8x256xf32, #tpu.memory_space<vmem>>, vector<1x8x256xf32>
    %114 = vector.shape_cast %113 : vector<1x8x256xf32> to vector<8x256xf32>
    %115 = vector.shape_cast %112 : vector<8x256xf32> to vector<1x8x256xf32>
    tpu.vector_store %arg12[%c0_35, %c0_36, %c0_37], %115 {strides = array<i32>} : memref<1x8x256xf32, #tpu.memory_space<vmem>>, vector<1x8x256xf32>,
    return
  }
  func.func @transform_0(%arg0: i32) -> (i32, i32, i32) {
    %c0_i32 = arith.constant 0 : i32
    %c0_i32_0 = arith.constant 0 : i32
    %c0_i32_1 = arith.constant 0 : i32
    return %arg0, %c0_i32, %c0_i32_0 : i32, i32, i32
  }
  func.func @transform_1(%arg0: i32) -> (i32, i32) {
    %c0_i32 = arith.constant 0 : i32
    %c0_i32_0 = arith.constant 0 : i32
    %c0_i32_1 = arith.constant 0 : i32
    return %c0_i32, %c0_i32_0 : i32, i32
  }
  func.func @transform_2(%arg0: i32) -> (i32, i32) {
    %c0_i32 = arith.constant 0 : i32
    %c0_i32_0 = arith.constant 0 : i32
    %c0_i32_1 = arith.constant 0 : i32
    return %c0_i32, %c0_i32_0 : i32, i32
  }
  func.func @transform_3(%arg0: i32) -> (i32, i32) {
    %c0_i32 = arith.constant 0 : i32
    %c0_i32_0 = arith.constant 0 : i32
    %c0_i32_1 = arith.constant 0 : i32
    return %c0_i32, %c0_i32_0 : i32, i32
  }
  func.func @transform_4(%arg0: i32) -> (i32, i32) {
    %c0_i32 = arith.constant 0 : i32
    %c0_i32_0 = arith.constant 0 : i32
    %c0_i32_1 = arith.constant 0 : i32
    return %c0_i32, %c0_i32_0 : i32, i32
  }
  func.func @transform_5(%arg0: i32) -> (i32, i32) {
    %c0_i32 = arith.constant 0 : i32
    %c0_i32_0 = arith.constant 0 : i32
    %c0_i32_1 = arith.constant 0 : i32
    return %c0_i32, %c0_i32_0 : i32, i32
  }
  func.func @transform_6(%arg0: i32) -> (i32, i32) {
    %c0_i32 = arith.constant 0 : i32
    %c0_i32_0 = arith.constant 0 : i32
    %c0_i32_1 = arith.constant 0 : i32
    return %c0_i32, %c0_i32_0 : i32, i32
  }
  func.func @transform_7(%arg0: i32) -> (i32, i32) {
    %c0_i32 = arith.constant 0 : i32
    %c0_i32_0 = arith.constant 0 : i32
    %c0_i32_1 = arith.constant 0 : i32
    return %c0_i32, %c0_i32_0 : i32, i32
  }
  func.func @transform_8(%arg0: i32) -> (i32, i32) {
    %c0_i32 = arith.constant 0 : i32
    %c0_i32_0 = arith.constant 0 : i32
    %c0_i32_1 = arith.constant 0 : i32
    return %c0_i32, %c0_i32_0 : i32, i32
  }
  func.func @transform_9(%arg0: i32) -> (i32, i32) {
    %c0_i32 = arith.constant 0 : i32
    %c0_i32_0 = arith.constant 0 : i32
    %c0_i32_1 = arith.constant 0 : i32
    return %c0_i32, %c0_i32_0 : i32, i32
  }
  func.func @transform_10(%arg0: i32) -> (i32, i32) {
    %c0_i32 = arith.constant 0 : i32
    %c0_i32_0 = arith.constant 0 : i32
    %c0_i32_1 = arith.constant 0 : i32
    return %c0_i32, %c0_i32_0 : i32, i32
  }
  func.func @transform_11(%arg0: i32) -> (i32, i32, i32) {
    %c0_i32 = arith.constant 0 : i32
    %c0_i32_0 = arith.constant 0 : i32
    %c0_i32_1 = arith.constant 0 : i32
    return %arg0, %c0_i32, %c0_i32_0 : i32, i32, i32
  }
}

</mosaic_0001>

<llo_original>
// kernel: patch_merging.1
$region0: #{patch_merging.1}
  #allocation0 [shape = 'u32[]', space=smem, size = 0x4, offset = 0x4, fixed_abs, tag = 'smem constant byte address 0x4 - core index']
  #allocation1 [shape = 'u32[72,128]{1,0:T(1,128)}', space=vmem, size = 0x9000, scoped, tag = 'internal scratch']
  %s0 = inlined_call_operand.vmem [shape: bf16[2,4,1024], index: 0, kind: input, shape index: {}]
  %s1 = inlined_call_operand.vmem [shape: bf16[16,4], index: 1, kind: input, shape index: {}]
  %s2 = inlined_call_operand.vmem [shape: f32[16,1], index: 2, kind: input, shape index: {}]
  %s3 = inlined_call_operand.vmem [shape: f32[16,9], index: 3, kind: input, shape index: {}]
  %s4 = inlined_call_operand.vmem [shape: f32[16,1], index: 4, kind: input, shape index: {}]
  %s5 = inlined_call_operand.vmem [shape: f32[16,4], index: 5, kind: input, shape index: {}]
  %s6 = inlined_call_operand.vmem [shape: f32[1,4], index: 6, kind: input, shape index: {}]
  %s7 = inlined_call_operand.vmem [shape: f32[16,4], index: 7, kind: input, shape index: {}]
  %s8 = inlined_call_operand.vmem [shape: f32[16,1], index: 8, kind: input, shape index: {}]
  %s9 = inlined_call_operand.vmem [shape: bf16[8,16], index: 9, kind: input, shape index: {}]
  %s10 = inlined_call_operand.vmem [shape: f32[8,1], index: 10, kind: input, shape index: {}]
  %s11 = inlined_call_operand.vmem [shape: f32[2,8,256], index: 11, kind: output, shape index: {}]
  %s12 = sld [smem:[#allocation0]]
  $region77: #{patch_merging.1} parent=0
    _
  %s14 = ssub.s32 1, %s12
  %s15 = scalar_select 0, %s14, %s12
  loop: start=0, step=1, limit=4
  $region2: #{patch_merging.1} parent=0 // loop_pre_header
    _
  $region3: #{patch_merging.1} parent=0 // loop_header
    %s17 = sphi 0, %s21
    %p18 = scmp.ge.s32.totalorder %s17, 4
    %s27 = sphi 0, %s29
    %s30 = sphi 0, %s27
    %s31 = sphi 0, %s30
    %s47 = sphi 0, %s31
    %s51 = sphi 0, %s51
    %s53 = sphi 0, %s51
    %s54 = sphi 0, %s53
    %s68 = sphi 0, %s54
    %s72 = sphi 0, %s72
    %s74 = sphi 0, %s72
    %s75 = sphi 0, %s74
    %s89 = sphi 0, %s75
    %s93 = sphi 0, %s93
    %s95 = sphi 0, %s93
    %s96 = sphi 0, %s95
    %s110 = sphi 0, %s96
    %s114 = sphi 0, %s114
    %s116 = sphi 0, %s114
    %s117 = sphi 0, %s116
    %s131 = sphi 0, %s117
    %s135 = sphi 0, %s135
    %s137 = sphi 0, %s135
    %s138 = sphi 0, %s137
    %s152 = sphi 0, %s138
    %s156 = sphi 0, %s156
    %s158 = sphi 0, %s156
    %s159 = sphi 0, %s158
    %s173 = sphi 0, %s159
    %s177 = sphi 0, %s177
    %s179 = sphi 0, %s177
    %s180 = sphi 0, %s179
    %s194 = sphi 0, %s180
    %s198 = sphi 0, %s198
    %s200 = sphi 0, %s198
    %s201 = sphi 0, %s200
    %s215 = sphi 0, %s201
    %s219 = sphi 0, %s219
    %s221 = sphi 0, %s219
    %s222 = sphi 0, %s221
    %s236 = sphi 0, %s222
    %s240 = sphi 0, %s240
    %s242 = sphi 0, %s240
    %s243 = sphi 0, %s242
    %s257 = sphi 0, %s243
    %s263 = sphi 0, %s265
    %s266 = sphi 0, %s263
    %s267 = sphi 0, %s266
    %s283 = sphi 0, %s267
  $region4: #{patch_merging.1} parent=0 // loop_header_branch
    %20 = sbr.rel (%p18) target = $region8
  $region5: #{patch_merging.1} parent=0 // loop_body
    %s22 = ssub.s32 %s17, 1
    %s23 = ssub.s32 %s17, 2
    %s24 = sadd.s32 %s17, 1
    %s25 = ssub.s32 %s17, %s24
    %p26 = scmp.eq.s32.totalorder %s25, 0
    %s28 = sadd.s32 %s27, 1
    %s29 = scalar_select %p26, %s27, %s28
    %p32 = pneg %p26
    %p33 = scmp.eq.s32.totalorder %s17, 1
    %p34 = por %p32, %p33
    %p35 = scmp.ne.s32.totalorder %s27, %s30
    %p36 = scmp.eq.s32.totalorder %s17, 0
    %p37 = por %p35, %p36
    %p38 = scmp.ne.s32.totalorder %s27, %s30
    %p39 = scmp.eq.s32.totalorder %s22, 1
    %p40 = por %p38, %p39
    %p41 = scmp.ne.s32.totalorder %s30, %s31
    %p42 = scmp.eq.s32.totalorder %s22, 0
    %p43 = por %p41, %p42
    %p44 = scmp.ne.s32.totalorder %s30, %s31
    %p45 = scmp.eq.s32.totalorder %s23, 1
    %p46 = por %p44, %p45
    %p48 = scmp.ne.s32.totalorder %s31, %s47
    %p49 = scmp.eq.s32.totalorder %s23, 0
    %p50 = por %p48, %p49
    %s52 = sadd.s32 %s51, 1
    %p55 = scmp.eq.s32.totalorder %s17, 1
    %p56 = scmp.ne.s32.totalorder %s51, %s53
    %p57 = scmp.eq.s32.totalorder %s17, 0
    %p58 = por %p56, %p57
    %p59 = scmp.ne.s32.totalorder %s51, %s53
    %p60 = scmp.eq.s32.totalorder %s22, 1
    %p61 = por %p59, %p60
    %p62 = scmp.ne.s32.totalorder %s53, %s54
    %p63 = scmp.eq.s32.totalorder %s22, 0
    %p64 = por %p62, %p63
    %p65 = scmp.ne.s32.totalorder %s53, %s54
    %p66 = scmp.eq.s32.totalorder %s23, 1
    %p67 = por %p65, %p66
    %p69 = scmp.ne.s32.totalorder %s54, %s68
    %p70 = scmp.eq.s32.totalorder %s23, 0
    %p71 = por %p69, %p70
    %s73 = sadd.s32 %s72, 1
    %p76 = scmp.eq.s32.totalorder %s17, 1
    %p77 = scmp.ne.s32.totalorder %s72, %s74
    %p78 = scmp.eq.s32.totalorder %s17, 0
    %p79 = por %p77, %p78
    %p80 = scmp.ne.s32.totalorder %s72, %s74
    %p81 = scmp.eq.s32.totalorder %s22, 1
    %p82 = por %p80, %p81
    %p83 = scmp.ne.s32.totalorder %s74, %s75
    %p84 = scmp.eq.s32.totalorder %s22, 0
    %p85 = por %p83, %p84
    %p86 = scmp.ne.s32.totalorder %s74, %s75
    %p87 = scmp.eq.s32.totalorder %s23, 1
    %p88 = por %p86, %p87
    %p90 = scmp.ne.s32.totalorder %s75, %s89
    %p91 = scmp.eq.s32.totalorder %s23, 0
    %p92 = por %p90, %p91
    %s94 = sadd.s32 %s93, 1
    %p97 = scmp.eq.s32.totalorder %s17, 1
    %p98 = scmp.ne.s32.totalorder %s93, %s95
    %p99 = scmp.eq.s32.totalorder %s17, 0
    %p100 = por %p98, %p99
    %p101 = scmp.ne.s32.totalorder %s93, %s95
    %p102 = scmp.eq.s32.totalorder %s22, 1
    %p103 = por %p101, %p102
    %p104 = scmp.ne.s32.totalorder %s95, %s96
    %p105 = scmp.eq.s32.totalorder %s22, 0
    %p106 = por %p104, %p105
    %p107 = scmp.ne.s32.totalorder %s95, %s96
    %p108 = scmp.eq.s32.totalorder %s23, 1
    %p109 = por %p107, %p108
    %p111 = scmp.ne.s32.totalorder %s96, %s110
    %p112 = scmp.eq.s32.totalorder %s23, 0
    %p113 = por %p111, %p112
    %s115 = sadd.s32 %s114, 1
    %p118 = scmp.eq.s32.totalorder %s17, 1
    %p119 = scmp.ne.s32.totalorder %s114, %s116
    %p120 = scmp.eq.s32.totalorder %s17, 0
    %p121 = por %p119, %p120
    %p122 = scmp.ne.s32.totalorder %s114, %s116
    %p123 = scmp.eq.s32.totalorder %s22, 1
    %p124 = por %p122, %p123
    %p125 = scmp.ne.s32.totalorder %s116, %s117
    %p126 = scmp.eq.s32.totalorder %s22, 0
    %p127 = por %p125, %p126
    %p128 = scmp.ne.s32.totalorder %s116, %s117
    %p129 = scmp.eq.s32.totalorder %s23, 1
    %p130 = por %p128, %p129
    %p132 = scmp.ne.s32.totalorder %s117, %s131
    %p133 = scmp.eq.s32.totalorder %s23, 0
    %p134 = por %p132, %p133
    %s136 = sadd.s32 %s135, 1
    %p139 = scmp.eq.s32.totalorder %s17, 1
    %p140 = scmp.ne.s32.totalorder %s135, %s137
    %p141 = scmp.eq.s32.totalorder %s17, 0
    %p142 = por %p140, %p141
    %p143 = scmp.ne.s32.totalorder %s135, %s137
    %p144 = scmp.eq.s32.totalorder %s22, 1
    %p145 = por %p143, %p144
    %p146 = scmp.ne.s32.totalorder %s137, %s138
    %p147 = scmp.eq.s32.totalorder %s22, 0
    %p148 = por %p146, %p147
    %p149 = scmp.ne.s32.totalorder %s137, %s138
    %p150 = scmp.eq.s32.totalorder %s23, 1
    %p151 = por %p149, %p150
    %p153 = scmp.ne.s32.totalorder %s138, %s152
    %p154 = scmp.eq.s32.totalorder %s23, 0
    %p155 = por %p153, %p154
    %s157 = sadd.s32 %s156, 1
    %p160 = scmp.eq.s32.totalorder %s17, 1
    %p161 = scmp.ne.s32.totalorder %s156, %s158
    %p162 = scmp.eq.s32.totalorder %s17, 0
    %p163 = por %p161, %p162
    %p164 = scmp.ne.s32.totalorder %s156, %s158
    %p165 = scmp.eq.s32.totalorder %s22, 1
    %p166 = por %p164, %p165
    %p167 = scmp.ne.s32.totalorder %s158, %s159
    %p168 = scmp.eq.s32.totalorder %s22, 0
    %p169 = por %p167, %p168
    %p170 = scmp.ne.s32.totalorder %s158, %s159
    %p171 = scmp.eq.s32.totalorder %s23, 1
    %p172 = por %p170, %p171
    %p174 = scmp.ne.s32.totalorder %s159, %s173
    %p175 = scmp.eq.s32.totalorder %s23, 0
    %p176 = por %p174, %p175
    %s178 = sadd.s32 %s177, 1
    %p181 = scmp.eq.s32.totalorder %s17, 1
    %p182 = scmp.ne.s32.totalorder %s177, %s179
    %p183 = scmp.eq.s32.totalorder %s17, 0
    %p184 = por %p182, %p183
    %p185 = scmp.ne.s32.totalorder %s177, %s179
    %p186 = scmp.eq.s32.totalorder %s22, 1
    %p187 = por %p185, %p186
    %p188 = scmp.ne.s32.totalorder %s179, %s180
    %p189 = scmp.eq.s32.totalorder %s22, 0
    %p190 = por %p188, %p189
    %p191 = scmp.ne.s32.totalorder %s179, %s180
    %p192 = scmp.eq.s32.totalorder %s23, 1
    %p193 = por %p191, %p192
    %p195 = scmp.ne.s32.totalorder %s180, %s194
    %p196 = scmp.eq.s32.totalorder %s23, 0
    %p197 = por %p195, %p196
    %s199 = sadd.s32 %s198, 1
    %p202 = scmp.eq.s32.totalorder %s17, 1
    %p203 = scmp.ne.s32.totalorder %s198, %s200
    %p204 = scmp.eq.s32.totalorder %s17, 0
    %p205 = por %p203, %p204
    %p206 = scmp.ne.s32.totalorder %s198, %s200
    %p207 = scmp.eq.s32.totalorder %s22, 1
    %p208 = por %p206, %p207
    %p209 = scmp.ne.s32.totalorder %s200, %s201
    %p210 = scmp.eq.s32.totalorder %s22, 0
    %p211 = por %p209, %p210
    %p212 = scmp.ne.s32.totalorder %s200, %s201
    %p213 = scmp.eq.s32.totalorder %s23, 1
    %p214 = por %p212, %p213
    %p216 = scmp.ne.s32.totalorder %s201, %s215
    %p217 = scmp.eq.s32.totalorder %s23, 0
    %p218 = por %p216, %p217
    %s220 = sadd.s32 %s219, 1
    %p223 = scmp.eq.s32.totalorder %s17, 1
    %p224 = scmp.ne.s32.totalorder %s219, %s221
    %p225 = scmp.eq.s32.totalorder %s17, 0
    %p226 = por %p224, %p225
    %p227 = scmp.ne.s32.totalorder %s219, %s221
    %p228 = scmp.eq.s32.totalorder %s22, 1
    %p229 = por %p227, %p228
    %p230 = scmp.ne.s32.totalorder %s221, %s222
    %p231 = scmp.eq.s32.totalorder %s22, 0
    %p232 = por %p230, %p231
    %p233 = scmp.ne.s32.totalorder %s221, %s222
    %p234 = scmp.eq.s32.totalorder %s23, 1
    %p235 = por %p233, %p234
    %p237 = scmp.ne.s32.totalorder %s222, %s236
    %p238 = scmp.eq.s32.totalorder %s23, 0
    %p239 = por %p237, %p238
    %s241 = sadd.s32 %s240, 1
    %p244 = scmp.eq.s32.totalorder %s17, 1
    %p245 = scmp.ne.s32.totalorder %s240, %s242
    %p246 = scmp.eq.s32.totalorder %s17, 0
    %p247 = por %p245, %p246
    %p248 = scmp.ne.s32.totalorder %s240, %s242
    %p249 = scmp.eq.s32.totalorder %s22, 1
    %p250 = por %p248, %p249
    %p251 = scmp.ne.s32.totalorder %s242, %s243
    %p252 = scmp.eq.s32.totalorder %s22, 0
    %p253 = por %p251, %p252
    %p254 = scmp.ne.s32.totalorder %s242, %s243
    %p255 = scmp.eq.s32.totalorder %s23, 1
    %p256 = por %p254, %p255
    %p258 = scmp.ne.s32.totalorder %s243, %s257
    %p259 = scmp.eq.s32.totalorder %s23, 0
    %p260 = por %p258, %p259
    %s261 = ssub.s32 %s17, %s24
    %p262 = scmp.eq.s32.totalorder %s261, 0
    %s264 = sadd.s32 %s263, 1
    %s265 = scalar_select %p262, %s263, %s264
    %p268 = pneg %p262
    %p269 = scmp.eq.s32.totalorder %s17, 1
    %p270 = por %p268, %p269
    %p271 = scmp.ne.s32.totalorder %s263, %s266
    %p272 = scmp.eq.s32.totalorder %s17, 0
    %p273 = por %p271, %p272
    %p274 = scmp.ne.s32.totalorder %s263, %s266
    %p275 = scmp.eq.s32.totalorder %s22, 1
    %p276 = por %p274, %p275
    %p277 = scmp.ne.s32.totalorder %s266, %s267
    %p278 = scmp.eq.s32.totalorder %s22, 0
    %p279 = por %p277, %p278
    %p280 = scmp.ne.s32.totalorder %s266, %s267
    %p281 = scmp.eq.s32.totalorder %s23, 1
    %p282 = por %p280, %p281
    %p284 = scmp.ne.s32.totalorder %s267, %s283
    %p285 = scmp.eq.s32.totalorder %s23, 0
    %p286 = por %p284, %p285
    %p287 = scmp.le.s32.totalorder 1, %s17
    %p288 = scmp.lt.s32.totalorder %s17, 3
    %p289 = pnand %p287, %p288
    %p290 = pneg %p289
    // Predicated region
    $region9: #{patch_merging.1} parent=5 // pred_check
      _
    $region10: #{patch_merging.1} parent=5 // pred_check_branch
      %292 = sbr.rel (%p289) target = $region12
    $region11: #{patch_merging.1} parent=5 // pred_region
      %s293 = ssub.s32 %s17, 1
      // Predicated region
      $region13: #{patch_merging.1} parent=11 // pred_check
        %p294 = pneg %p64
      $region14: #{patch_merging.1} parent=11 // pred_check_branch
        %296 = sbr.rel (%p294) target = $region16
      $region15: #{patch_merging.1} parent=11 // pred_region
        _
      $region16: #{patch_merging.1} parent=11 // pred_fallthru
        _
      // Predicated region
      $region17: #{patch_merging.1} parent=11 // pred_check
        %p297 = pneg %p85
      $region18: #{patch_merging.1} parent=11 // pred_check_branch
        %299 = sbr.rel (%p297) target = $region20
      $region19: #{patch_merging.1} parent=11 // pred_region
        _
      $region20: #{patch_merging.1} parent=11 // pred_fallthru
        _
      // Predicated region
      $region21: #{patch_merging.1} parent=11 // pred_check
        %p300 = pneg %p106
      $region22: #{patch_merging.1} parent=11 // pred_check_branch
        %302 = sbr.rel (%p300) target = $region24
      $region23: #{patch_merging.1} parent=11 // pred_region
        _
      $region24: #{patch_merging.1} parent=11 // pred_fallthru
        _
      // Predicated region
      $region25: #{patch_merging.1} parent=11 // pred_check
        %p303 = pneg %p127
      $region26: #{patch_merging.1} parent=11 // pred_check_branch
        %305 = sbr.rel (%p303) target = $region28
      $region27: #{patch_merging.1} parent=11 // pred_region
        _
      $region28: #{patch_merging.1} parent=11 // pred_fallthru
        _
      // Predicated region
      $region29: #{patch_merging.1} parent=11 // pred_check
        %p306 = pneg %p148
      $region30: #{patch_merging.1} parent=11 // pred_check_branch
        %308 = sbr.rel (%p306) target = $region32
      $region31: #{patch_merging.1} parent=11 // pred_region
        _
      $region32: #{patch_merging.1} parent=11 // pred_fallthru
        _
      // Predicated region
      $region33: #{patch_merging.1} parent=11 // pred_check
        %p309 = pneg %p169
      $region34: #{patch_merging.1} parent=11 // pred_check_branch
        %311 = sbr.rel (%p309) target = $region36
      $region35: #{patch_merging.1} parent=11 // pred_region
        _
      $region36: #{patch_merging.1} parent=11 // pred_fallthru
        _
      // Predicated region
      $region37: #{patch_merging.1} parent=11 // pred_check
        %p312 = pneg %p190
      $region38: #{patch_merging.1} parent=11 // pred_check_branch
        %314 = sbr.rel (%p312) target = $region40
      $region39: #{patch_merging.1} parent=11 // pred_region
        _
      $region40: #{patch_merging.1} parent=11 // pred_fallthru
        _
      // Predicated region
      $region41: #{patch_merging.1} parent=11 // pred_check
        %p315 = pneg %p211
      $region42: #{patch_merging.1} parent=11 // pred_check_branch
        %317 = sbr.rel (%p315) target = $region44
      $region43: #{patch_merging.1} parent=11 // pred_region
        _
      $region44: #{patch_merging.1} parent=11 // pred_fallthru
        _
      // Predicated region
      $region45: #{patch_merging.1} parent=11 // pred_check
        %p318 = pneg %p232
      $region46: #{patch_merging.1} parent=11 // pred_check_branch
        %320 = sbr.rel (%p318) target = $region48
      $region47: #{patch_merging.1} parent=11 // pred_region
        _
      $region48: #{patch_merging.1} parent=11 // pred_fallthru
        _
      // Predicated region
      $region49: #{patch_merging.1} parent=11 // pred_check
        %p321 = pneg %p253
      $region50: #{patch_merging.1} parent=11 // pred_check_branch
        %323 = sbr.rel (%p321) target = $region52
      $region51: #{patch_merging.1} parent=11 // pred_region
        _
      $region52: #{patch_merging.1} parent=11 // pred_fallthru
        _
    $region12: #{patch_merging.1} parent=5 // pred_fallthru
      _
    %p324 = scmp.lt.s32.totalorder %s17, 2
    // Predicated region
    $region53: #{patch_merging.1} parent=5 // pred_check
      %p325 = pneg %p324
    $region54: #{patch_merging.1} parent=5 // pred_check_branch
      %327 = sbr.rel (%p325) target = $region56
    $region55: #{patch_merging.1} parent=5 // pred_region
      // Predicated region
      $region57: #{patch_merging.1} parent=55 // pred_check
        %p328 = pneg %p37
      $region58: #{patch_merging.1} parent=55 // pred_check_branch
        %330 = sbr.rel (%p328) target = $region60
      $region59: #{patch_merging.1} parent=55 // pred_region
        %p331 = scmp.lt.s32.totalorder %s17, 1
        %s332 = scalar_select %p331, %s17, 1
        %s333 = smul.addr %s332, 8
        %s334 = smul.addr %s333, 2
        %s335 = scalar_lea.vmem %s0, %s334
      $region60: #{patch_merging.1} parent=55 // pred_fallthru
        _
    $region56: #{patch_merging.1} parent=5 // pred_fallthru
      _
    %p336 = scmp.le.s32.totalorder 1, %s17
    %p337 = scmp.lt.s32.totalorder %s17, 3
    %p338 = pnand %p336, %p337
    %p339 = pneg %p338
    // Predicated region
    $region61: #{patch_merging.1} parent=5 // pred_check
      _
    $region62: #{patch_merging.1} parent=5 // pred_check_branch
      %341 = sbr.rel (%p338) target = $region64
    $region63: #{patch_merging.1} parent=5 // pred_region
      %s342 = ssub.s32 %s17, 1
      %p343 = scmp.lt.s32.totalorder %s22, 1
      %s344 = scalar_select %p343, %s22, 1
      %s345 = smul.addr %s344, 8
      %s346 = smul.addr %s345, 2
      %s347 = scalar_lea.vmem %s0, %s346
      %p348 = pneg %p43
      %p349 = pneg %p40
      %p350 = pneg %p64
      %p351 = pneg %p61
      %p352 = pneg %p85
      %p353 = pneg %p82
      %p354 = pneg %p106
      %p355 = pneg %p103
      %p356 = pneg %p127
      %p357 = pneg %p124
      %p358 = pneg %p148
      %p359 = pneg %p145
      %p360 = pneg %p169
      %p361 = pneg %p166
      %p362 = pneg %p190
      %p363 = pneg %p187
      %p364 = pneg %p211
      %p365 = pneg %p208
      %p366 = pneg %p232
      %p367 = pneg %p229
      %p368 = pneg %p253
      %p369 = pneg %p250
      %p370 = pneg %p279
      %p371 = pneg %p276
      %p372 = scmp.lt.s32.totalorder %s22, 1
      %s373 = scalar_select %p372, %s22, 1
      %s374 = smul.addr %s373, 2
      %s375 = smul.addr %s374, 8
      %s376 = scalar_lea.vmem %s11, %s375
      %p377 = scmp.lt.s32.totalorder %s22, 1
      %s378 = scalar_select %p377, %s22, 1
      %s379 = smul.addr %s378, 8
      %s380 = smul.addr %s379, 2
      %s381 = scalar_lea.vmem %s0, %s380
      %p382 = scmp.lt.s32.totalorder %s22, 1
      %s383 = scalar_select %p382, %s22, 1
      %s384 = smul.addr %s383, 2
      %s385 = smul.addr %s384, 8
      %s386 = scalar_lea.vmem %s11, %s385
      %v388 = vld [vmem:[%s1] sm:$0xf]
      %v389 = vld [vmem:[%s1 + $0x4] sm:$0xf]
      %v390 = vld [vmem:[%s2] sm:$0xff]
      %v391 = vld [vmem:[%s2 + $0x8] sm:$0xff]
      %v392 = vld [vmem:[%s381] sm:$0xff]
      %v393 = vld [vmem:[%s381 + $0x8] sm:$0xff]
      %395 = vset.pattern.permute.xlu0 0
      %396 = vperm.xlu0 %395, %v390
      %v397 = vpop.permute.xlu0 %396
      %400 = vset.pattern.permute.xlu0 0
      %401 = vperm.xlu0 %400, %v391
      %v402 = vpop.permute.xlu0 %401
      %v406 = vunpack.c.l.b16 %v388
      %v407 = vunpack.c.l.b16 %v389
      %v408 = vpack.c.b16 %v407, %v406
      %410 = vst [vmem:[#allocation1] ss:$4 sm:$0xff] %v392
      %s412 = scalar_lea.vmem [#allocation1], 32
      %413 = vst [vmem:[%s412] ss:$4 sm:$0xff] %v393
      %v414 = vld.sshfl [vmem:[#allocation1] sm:$0xff pattern:$0x73625140]
      %v415 = vld.sshfl [vmem:[#allocation1 + $0x8] sm:$0xff pattern:$0x73625140]
      %v416 = vld.sshfl [vmem:[#allocation1 + $0x10] sm:$0xff pattern:$0x73625140]
      %v417 = vld.sshfl [vmem:[#allocation1 + $0x18] sm:$0xff pattern:$0x73625140]
      %v418 = vld.sshfl [vmem:[#allocation1 + $0x20] sm:$0xff pattern:$0x73625140]
      %v419 = vld.sshfl [vmem:[#allocation1 + $0x28] sm:$0xff pattern:$0x73625140]
      %v420 = vld.sshfl [vmem:[#allocation1 + $0x30] sm:$0xff pattern:$0x73625140]
      %v421 = vld.sshfl [vmem:[#allocation1 + $0x38] sm:$0xff pattern:$0x73625140]
      %vm422 = vcmask 31744
      %v424 = vsel %vm422, %v408, 0
      %vm426 = vcmask 1041408
      %v427 = vsel %vm426, %v414, 0
      %v429 = vsel %vm426, %v415, 0
      %v431 = vsel %vm426, %v416, 0
      %v433 = vsel %vm426, %v417, 0
      %v435 = vsel %vm426, %v418, 0
      %v437 = vsel %vm426, %v419, 0
      %v439 = vsel %vm426, %v420, 0
      %v441 = vsel %vm426, %v421, 0
      %443 = vmatpush.bf16.msra.mxu0 0
      %444 = vmatpush.bf16.msra.mxu0 0
      %445 = vmatpush.bf16.msra.mxu0 0
      %446 = vmatpush.bf16.msra.mxu0 0
      %447 = vmatpush.bf16.msra.mxu0 0
      %448 = vmatpush.bf16.msra.mxu0 0
      %449 = vmatpush.bf16.msra.mxu0 0
      %450 = vmatpush.bf16.msra.mxu0 %v427
      %451 = vmatmul.bf16.gmra.mxu0 %v424
      %v452 = vpop.f32.mrf.mxu0
      %v453 = vadd.f32 %v397, %v452
      %v454 = vpop.f32.mrf.mxu0
      %v455 = vadd.f32 %v402, %v454
      %456 = vdwg.mxu0
      %457 = vmatpush.bf16.msra.mxu0 0
      %458 = vmatpush.bf16.msra.mxu0 0
      %459 = vmatpush.bf16.msra.mxu0 0
      %460 = vmatpush.bf16.msra.mxu0 0
      %461 = vmatpush.bf16.msra.mxu0 0
      %462 = vmatpush.bf16.msra.mxu0 0
      %463 = vmatpush.bf16.msra.mxu0 0
      %464 = vmatpush.bf16.msra.mxu0 %v429
      %465 = vmatmul.bf16.gmra.mxu0 %v424
      %v466 = vpop.f32.mrf.mxu0
      %v467 = vadd.f32 %v397, %v466
      %v468 = vpop.f32.mrf.mxu0
      %v469 = vadd.f32 %v402, %v468
      %470 = vdwg.mxu0
      %471 = vmatpush.bf16.msra.mxu0 0
      %472 = vmatpush.bf16.msra.mxu0 0
      %473 = vmatpush.bf16.msra.mxu0 0
      %474 = vmatpush.bf16.msra.mxu0 0
      %475 = vmatpush.bf16.msra.mxu0 0
      %476 = vmatpush.bf16.msra.mxu0 0
      %477 = vmatpush.bf16.msra.mxu0 0
      %478 = vmatpush.bf16.msra.mxu0 %v431
      %479 = vmatmul.bf16.gmra.mxu0 %v424
      %v480 = vpop.f32.mrf.mxu0
      %v481 = vadd.f32 %v397, %v480
      %v482 = vpop.f32.mrf.mxu0
      %v483 = vadd.f32 %v402, %v482
      %484 = vdwg.mxu0
      %485 = vmatpush.bf16.msra.mxu0 0
      %486 = vmatpush.bf16.msra.mxu0 0
      %487 = vmatpush.bf16.msra.mxu0 0
      %488 = vmatpush.bf16.msra.mxu0 0
      %489 = vmatpush.bf16.msra.mxu0 0
      %490 = vmatpush.bf16.msra.mxu0 0
      %491 = vmatpush.bf16.msra.mxu0 0
      %492 = vmatpush.bf16.msra.mxu0 %v433
      %493 = vmatmul.bf16.gmra.mxu0 %v424
      %v494 = vpop.f32.mrf.mxu0
      %v495 = vadd.f32 %v397, %v494
      %v496 = vpop.f32.mrf.mxu0
      %v497 = vadd.f32 %v402, %v496
      %498 = vdwg.mxu0
      %499 = vmatpush.bf16.msra.mxu0 0
      %500 = vmatpush.bf16.msra.mxu0 0
      %501 = vmatpush.bf16.msra.mxu0 0
      %502 = vmatpush.bf16.msra.mxu0 0
      %503 = vmatpush.bf16.msra.mxu0 0
      %504 = vmatpush.bf16.msra.mxu0 0
      %505 = vmatpush.bf16.msra.mxu0 0
      %506 = vmatpush.bf16.msra.mxu0 %v435
      %507 = vmatmul.bf16.gmra.mxu0 %v424
      %v508 = vpop.f32.mrf.mxu0
      %v509 = vadd.f32 %v397, %v508
      %v510 = vpop.f32.mrf.mxu0
      %v511 = vadd.f32 %v402, %v510
      %512 = vdwg.mxu0
      %513 = vmatpush.bf16.msra.mxu0 0
      %514 = vmatpush.bf16.msra.mxu0 0
      %515 = vmatpush.bf16.msra.mxu0 0
      %516 = vmatpush.bf16.msra.mxu0 0
      %517 = vmatpush.bf16.msra.mxu0 0
      %518 = vmatpush.bf16.msra.mxu0 0
      %519 = vmatpush.bf16.msra.mxu0 0
      %520 = vmatpush.bf16.msra.mxu0 %v437
      %521 = vmatmul.bf16.gmra.mxu0 %v424
      %v522 = vpop.f32.mrf.mxu0
      %v523 = vadd.f32 %v397, %v522
      %v524 = vpop.f32.mrf.mxu0
      %v525 = vadd.f32 %v402, %v524
      %526 = vdwg.mxu0
      %527 = vmatpush.bf16.msra.mxu0 0
      %528 = vmatpush.bf16.msra.mxu0 0
      %529 = vmatpush.bf16.msra.mxu0 0
      %530 = vmatpush.bf16.msra.mxu0 0
      %531 = vmatpush.bf16.msra.mxu0 0
      %532 = vmatpush.bf16.msra.mxu0 0
      %533 = vmatpush.bf16.msra.mxu0 0
      %534 = vmatpush.bf16.msra.mxu0 %v439
      %535 = vmatmul.bf16.gmra.mxu0 %v424
      %v536 = vpop.f32.mrf.mxu0
      %v537 = vadd.f32 %v397, %v536
      %v538 = vpop.f32.mrf.mxu0
      %v539 = vadd.f32 %v402, %v538
      %540 = vdwg.mxu0
      %541 = vmatpush.bf16.msra.mxu0 0
      %542 = vmatpush.bf16.msra.mxu0 0
      %543 = vmatpush.bf16.msra.mxu0 0
      %544 = vmatpush.bf16.msra.mxu0 0
      %545 = vmatpush.bf16.msra.mxu0 0
      %546 = vmatpush.bf16.msra.mxu0 0
      %547 = vmatpush.bf16.msra.mxu0 0
      %548 = vmatpush.bf16.msra.mxu0 %v441
      %549 = vmatmul.bf16.gmra.mxu0 %v424
      %v550 = vpop.f32.mrf.mxu0
      %v551 = vadd.f32 %v397, %v550
      %v552 = vpop.f32.mrf.mxu0
      %v553 = vadd.f32 %v402, %v552
      %554 = vdwg.mxu0
      %v555 = vmax.f32 %v453, 0.0
      %v556 = vmax.f32 %v467, 0.0
      %v557 = vmax.f32 %v481, 0.0
      %v558 = vmax.f32 %v495, 0.0
      %v559 = vmax.f32 %v509, 0.0
      %v560 = vmax.f32 %v523, 0.0
      %v561 = vmax.f32 %v537, 0.0
      %v562 = vmax.f32 %v551, 0.0
      %v563 = vmax.f32 %v455, 0.0
      %v564 = vmax.f32 %v469, 0.0
      %v565 = vmax.f32 %v483, 0.0
      %v566 = vmax.f32 %v497, 0.0
      %v567 = vmax.f32 %v511, 0.0
      %v568 = vmax.f32 %v525, 0.0
      %v569 = vmax.f32 %v539, 0.0
      %v570 = vmax.f32 %v553, 0.0
      %v571 = vlaneseq
      %v572 = vand.u32 %v571, 127
      %v573 = vadd.s32 %v572, 128
      %v574 = vcvt.s32.f32 %v572
      %v575 = vcvt.s32.f32 %v573
      %v576 = vadd.f32 %v574, 0.5
      %v577 = vadd.f32 %v575, 0.5
      %v578 = vmul.f32 %v576, 0.0625
      %v579 = vmul.f32 %v577, 0.0625
      %v580 = vfloor.f32 %v578
      %v581 = vfloor.f32 %v579
      %v582 = vmul.f32 %v580, 16.0
      %v583 = vmul.f32 %v581, 16.0
      %vm584 = vcmp.gt.f32.partialorder %v574, %v582
      %vm585 = vcmp.gt.f32.partialorder %v575, %v583
      %v586 = vsel %vm584, 1, 0
      %v587 = vsel %vm585, 1, 0
      %v588 = vcvt.s32.f32 %v586
      %v589 = vcvt.s32.f32 %v587
      %vm590 = vcmp.gt.f32.partialorder %v580, 0.5
      %vm591 = vcmp.gt.f32.partialorder %v581, 0.5
      %v592 = vsel %vm590, 1, 0
      %v593 = vsel %vm591, 1, 0
      %v594 = vcvt.s32.f32 %v592
      %v595 = vcvt.s32.f32 %v593
      %v596 = vld [vmem:[%s3] sm:$0xff]
      %v597 = vld [vmem:[%s3 + $0x8] sm:$0xff]
      %599 = vset.pattern.permute.xlu0 4
      %600 = vperm.xlu0 %599, %v596
      %v601 = vpop.permute.xlu0 %600
      %604 = vset.pattern.permute.xlu0 4
      %605 = vperm.xlu0 %604, %v597
      %v606 = vpop.permute.xlu0 %605
      %v608 = vmul.f32 %v601, %v555
      %v609 = vmul.f32 %v601, %v556
      %v610 = vmul.f32 %v606, %v563
      %v611 = vmul.f32 %v606, %v564
      %612 = vset.pattern.permute.xlu0 5
      %613 = vperm.xlu0 %612, %v596
      %v614 = vpop.permute.xlu0 %613
      %616 = vset.pattern.permute.xlu0 5
      %617 = vperm.xlu0 %616, %v597
      %v618 = vpop.permute.xlu0 %617
      %v620 = vmul.f32 %v614, %v557
      %v621 = vmul.f32 %v614, %v558
      %v622 = vmul.f32 %v618, %v565
      %v623 = vmul.f32 %v618, %v566
      %v624 = vadd.f32 %v608, %v620
      %v625 = vadd.f32 %v609, %v621
      %v626 = vadd.f32 %v610, %v622
      %v627 = vadd.f32 %v611, %v623
      %628 = vset.pattern.permute.xlu0 7
      %629 = vperm.xlu0 %628, %v596
      %v630 = vpop.permute.xlu0 %629
      %632 = vset.pattern.permute.xlu0 7
      %633 = vperm.xlu0 %632, %v597
      %v634 = vpop.permute.xlu0 %633
      %v636 = vmul.f32 %v630, %v559
      %v637 = vmul.f32 %v630, %v560
      %v638 = vmul.f32 %v634, %v567
      %v639 = vmul.f32 %v634, %v568
      %v640 = vadd.f32 %v624, %v636
      %v641 = vadd.f32 %v625, %v637
      %v642 = vadd.f32 %v626, %v638
      %v643 = vadd.f32 %v627, %v639
      %644 = vset.pattern.permute.xlu0 8
      %645 = vperm.xlu0 %644, %v596
      %v646 = vpop.permute.xlu0 %645
      %648 = vset.pattern.permute.xlu0 8
      %649 = vperm.xlu0 %648, %v597
      %v650 = vpop.permute.xlu0 %649
      %v652 = vmul.f32 %v646, %v561
      %v653 = vmul.f32 %v646, %v562
      %v654 = vmul.f32 %v650, %v569
      %v655 = vmul.f32 %v650, %v570
      %v656 = vadd.f32 %v640, %v652
      %v657 = vadd.f32 %v641, %v653
      %v658 = vadd.f32 %v642, %v654
      %v659 = vadd.f32 %v643, %v655
      %660 = vset.pattern.permute.xlu0 3
      %661 = vperm.xlu0 %660, %v596
      %v662 = vpop.permute.xlu0 %661
      %664 = vset.pattern.permute.xlu0 3
      %665 = vperm.xlu0 %664, %v597
      %v666 = vpop.permute.xlu0 %665
      %v668 = vmul.f32 %v662, %v557
      %v669 = vmul.f32 %v662, %v558
      %v670 = vmul.f32 %v666, %v565
      %v671 = vmul.f32 %v666, %v566
      %672 = vset.pattern.permute.xlu0 6
      %673 = vperm.xlu0 %672, %v596
      %v674 = vpop.permute.xlu0 %673
      %676 = vset.pattern.permute.xlu0 6
      %677 = vperm.xlu0 %676, %v597
      %v678 = vpop.permute.xlu0 %677
      %v680 = vmul.f32 %v674, %v561
      %v681 = vmul.f32 %v674, %v562
      %v682 = vmul.f32 %v678, %v569
      %v683 = vmul.f32 %v678, %v570
      %v684 = vadd.f32 %v668, %v680
      %v685 = vadd.f32 %v669, %v681
      %v686 = vadd.f32 %v670, %v682
      %v687 = vadd.f32 %v671, %v683
      %688 = vrot.lane.b32.xlu0 %v684, 1
      %v689 = vpop.permute.xlu0 %688
      %690 = vrot.lane.b32.xlu0 %v686, 1
      %v691 = vpop.permute.xlu0 %690
      %692 = vrot.lane.b32.xlu0 %v685, 1
      %v693 = vpop.permute.xlu0 %692
      %694 = vrot.lane.b32.xlu0 %v687, 1
      %v695 = vpop.permute.xlu0 %694
      %vm696 = vcmp.lt.s32.totalorder %v572, 1
      %v697 = vsel %vm696, %v689, %v693
      %v698 = vsel %vm696, %v691, %v695
      %v699 = vsel %vm696, %v693, %v689
      %v700 = vsel %vm696, %v695, %v691
      %v701 = vmul.f32 %v588, %v699
      %v702 = vmul.f32 %v589, %v697
      %v703 = vmul.f32 %v588, %v700
      %v704 = vmul.f32 %v589, %v698
      %v705 = vadd.f32 %v656, %v701
      %v706 = vadd.f32 %v657, %v702
      %v707 = vadd.f32 %v658, %v703
      %v708 = vadd.f32 %v659, %v704
      %709 = vset.pattern.permute.xlu0 1
      %710 = vperm.xlu0 %709, %v596
      %v711 = vpop.permute.xlu0 %710
      %713 = vset.pattern.permute.xlu0 1
      %714 = vperm.xlu0 %713, %v597
      %v715 = vpop.permute.xlu0 %714
      %v717 = vmul.f32 %v711, %v559
      %v718 = vmul.f32 %v711, %v560
      %v719 = vmul.f32 %v715, %v567
      %v720 = vmul.f32 %v715, %v568
      %721 = vset.pattern.permute.xlu0 2
      %722 = vperm.xlu0 %721, %v596
      %v723 = vpop.permute.xlu0 %722
      %725 = vset.pattern.permute.xlu0 2
      %726 = vperm.xlu0 %725, %v597
      %v727 = vpop.permute.xlu0 %726
      %v729 = vmul.f32 %v723, %v561
      %v730 = vmul.f32 %v723, %v562
      %v731 = vmul.f32 %v727, %v569
      %v732 = vmul.f32 %v727, %v570
      %v733 = vadd.f32 %v717, %v729
      %v734 = vadd.f32 %v718, %v730
      %v735 = vadd.f32 %v719, %v731
      %v736 = vadd.f32 %v720, %v732
      %737 = vrot.lane.b32.xlu0 %v733, 16
      %v738 = vpop.permute.xlu0 %737
      %739 = vrot.lane.b32.xlu0 %v735, 16
      %v740 = vpop.permute.xlu0 %739
      %741 = vrot.lane.b32.xlu0 %v734, 16
      %v742 = vpop.permute.xlu0 %741
      %743 = vrot.lane.b32.xlu0 %v736, 16
      %v744 = vpop.permute.xlu0 %743
      %vm745 = vcmp.lt.s32.totalorder %v572, 16
      %v746 = vsel %vm745, %v738, %v742
      %v747 = vsel %vm745, %v740, %v744
      %v748 = vsel %vm745, %v742, %v738
      %v749 = vsel %vm745, %v744, %v740
      %v750 = vmul.f32 %v594, %v748
      %v751 = vmul.f32 %v595, %v746
      %v752 = vmul.f32 %v594, %v749
      %v753 = vmul.f32 %v595, %v747
      %v754 = vadd.f32 %v705, %v750
      %v755 = vadd.f32 %v706, %v751
      %v756 = vadd.f32 %v707, %v752
      %v757 = vadd.f32 %v708, %v753
      %v758 = vmul.f32 %v594, %v588
      %v759 = vmul.f32 %v595, %v589
      %760 = vset.pattern.permute.xlu0 0
      %761 = vperm.xlu0 %760, %v596
      %v762 = vpop.permute.xlu0 %761
      %764 = vset.pattern.permute.xlu0 0
      %765 = vperm.xlu0 %764, %v597
      %v766 = vpop.permute.xlu0 %765
      %v768 = vmul.f32 %v762, %v561
      %v769 = vmul.f32 %v762, %v562
      %v770 = vmul.f32 %v766, %v569
      %v771 = vmul.f32 %v766, %v570
      %772 = vrot.lane.b32.xlu0 %v768, 17
      %v773 = vpop.permute.xlu0 %772
      %774 = vrot.lane.b32.xlu0 %v770, 17
      %v775 = vpop.permute.xlu0 %774
      %776 = vrot.lane.b32.xlu0 %v769, 17
      %v777 = vpop.permute.xlu0 %776
      %778 = vrot.lane.b32.xlu0 %v771, 17
      %v779 = vpop.permute.xlu0 %778
      %vm780 = vcmp.lt.s32.totalorder %v572, 17
      %v781 = vsel %vm780, %v773, %v777
      %v782 = vsel %vm780, %v775, %v779
      %v783 = vsel %vm780, %v777, %v773
      %v784 = vsel %vm780, %v779, %v775
      %v785 = vmul.f32 %v758, %v783
      %v786 = vmul.f32 %v759, %v781
      %v787 = vmul.f32 %v758, %v784
      %v788 = vmul.f32 %v759, %v782
      %v789 = vadd.f32 %v754, %v785
      %v790 = vadd.f32 %v755, %v786
      %v791 = vadd.f32 %v756, %v787
      %v792 = vadd.f32 %v757, %v788
      %v793 = vld [vmem:[%s4] sm:$0xff]
      %v794 = vld [vmem:[%s4 + $0x8] sm:$0xff]
      %796 = vset.pattern.permute.xlu0 0
      %797 = vperm.xlu0 %796, %v793
      %v798 = vpop.permute.xlu0 %797
      %801 = vset.pattern.permute.xlu0 0
      %802 = vperm.xlu0 %801, %v794
      %v803 = vpop.permute.xlu0 %802
      %v805 = vadd.f32 %v789, %v798
      %v806 = vadd.f32 %v790, %v798
      %v807 = vadd.f32 %v791, %v803
      %v808 = vadd.f32 %v792, %v803
      %v809 = vmax.f32 %v805, 0.0
      %v810 = vmax.f32 %v806, 0.0
      %v811 = vmax.f32 %v807, 0.0
      %v812 = vmax.f32 %v808, 0.0
      %v813 = vadd.f32 %v809, %v810
      %814 = vadd.xlane.f32.xlu0 %v813
      %v815 = vpop.xlane.xlu0 %814
      %v816 = vadd.f32 %v811, %v812
      %817 = vadd.xlane.f32.xlu0 %v816
      %v818 = vpop.xlane.xlu0 %817
      %v819 = vrcp.pop 256.0
      %v820 = vmul.f32 256.0, %v819
      %v821 = vsub.f32 1.0, %v820
      %v822 = vmul.f32 %v819, %v821
      %v823 = vadd.f32 %v819, %v822
      %vm824 = vweird.f32 %v819
      %v825 = vsel %vm824, %v819, %v823
      %v826 = vmul.f32 %v815, %v825
      %v827 = vmul.f32 %v818, %v825
      %v828 = vld [vmem:[%s5] sm:$0xff]
      %v829 = vld [vmem:[%s5 + $0x8] sm:$0xff]
      %v830 = vmul.f32 %v828, %v826
      %v831 = vmul.f32 %v829, %v827
      %v832 = vsel %vm422, %v830, 0.0
      %v833 = vsel %vm422, %v831, 0.0
      %v834 = vadd.f32 %v832, %v833
      %v835 = vrot.slane %v834, 4
      %v836 = vadd.f32 %v834, %v835
      %v837 = vrot.slane %v836, 2
      %v838 = vadd.f32 %v836, %v837
      %v839 = vrot.slane %v838, 1
      %v840 = vadd.f32 %v838, %v839
      %v841 = vld [vmem:[%s6] sm:$0x1]
      %v842 = vadd.f32 %v840, %v841
      %v843 = vmax.f32 %v842, 0.0
      %v844 = vld [vmem:[%s7] sm:$0xff]
      %v845 = vld [vmem:[%s7 + $0x8] sm:$0xff]
      %v846 = vperm.slane %v843, 0
      %v847 = vmul.f32 %v844, %v846
      %v848 = vmul.f32 %v845, %v846
      %v849 = vsel %vm422, %v847, 0.0
      %850 = vadd.xlane.f32.xlu0 %v849
      %v851 = vpop.xlane.xlu0 %850
      %v852 = vsel %vm422, %v848, 0.0
      %853 = vadd.xlane.f32.xlu0 %v852
      %v854 = vpop.xlane.xlu0 %853
      %v855 = vld [vmem:[%s8] sm:$0xff]
      %v856 = vld [vmem:[%s8 + $0x8] sm:$0xff]
      %v857 = vadd.f32 %v851, %v855
      %v858 = vadd.f32 %v854, %v856
      %v859 = vxor.u32 %v857, 2147483648
      %v860 = vxor.u32 %v858, 2147483648
      %v861 = vmul.f32 %v859, 1.442695
      %v862 = vpow.pop %v861
      %v863 = vmul.f32 %v860, 1.442695
      %v864 = vpow.pop %v863
      %v865 = vadd.f32 %v862, 1.0
      %v866 = vadd.f32 %v864, 1.0
      %v867 = vrcp.pop %v865
      %v868 = vmul.f32 %v865, %v867
      %v869 = vsub.f32 1.0, %v868
      %v870 = vmul.f32 %v867, %v869
      %v871 = vadd.f32 %v867, %v870
      %vm872 = vweird.f32 %v865
      %vm873 = vweird.f32 %v867
      %vm874 = vmor %vm872, %vm873
      %v875 = vsel %vm874, %v867, %v871
      %v876 = vand.u32 2147483647, %v865
      %vm877 = vcmp.eq.f32.partialorder %v876, 8.507059e+37
      %v878 = vand.u32 %v865, 2147483648
      %v879 = vor.u32 1.1754944e-38, %v878
      %v880 = vsel %vm877, %v879, %v875
      %v881 = vmul.f32 1.0, %v880
      %v882 = vrcp.pop %v866
      %v883 = vmul.f32 %v866, %v882
      %v884 = vsub.f32 1.0, %v883
      %v885 = vmul.f32 %v882, %v884
      %v886 = vadd.f32 %v882, %v885
      %vm887 = vweird.f32 %v866
      %vm888 = vweird.f32 %v882
      %vm889 = vmor %vm887, %vm888
      %v890 = vsel %vm889, %v882, %v886
      %v891 = vand.u32 2147483647, %v866
      %vm892 = vcmp.eq.f32.partialorder %v891, 8.507059e+37
      %v893 = vand.u32 %v866, 2147483648
      %v894 = vor.u32 1.1754944e-38, %v893
      %v895 = vsel %vm892, %v894, %v890
      %v896 = vmul.f32 1.0, %v895
      %898 = vset.pattern.permute.xlu0 0
      %899 = vperm.xlu0 %898, %v881
      %v900 = vpop.permute.xlu0 %899
      %903 = vset.pattern.permute.xlu0 0
      %904 = vperm.xlu0 %903, %v896
      %v905 = vpop.permute.xlu0 %904
      %v907 = vmul.f32 %v809, %v900
      %v908 = vmul.f32 %v810, %v900
      %v909 = vmul.f32 %v811, %v905
      %v910 = vmul.f32 %v812, %v905
      %v911 = vpack.c.bf16 %v909, %v907
      %v912 = vpack.c.bf16 %v910, %v908
      %v913 = vld [vmem:[%s9] sm:$0xf]
      %v914 = vld [vmem:[%s10] sm:$0xff]
      %916 = vset.pattern.permute.xlu0 0
      %917 = vperm.xlu0 %916, %v914
      %v918 = vpop.permute.xlu0 %917
      %vm920 = vcmask 130048
      %v922 = vsel %vm920, %v913, 0
      %924 = vmatpush.bf16.msra.mxu0 0
      %925 = vmatpush.bf16.msra.mxu0 0
      %926 = vmatpush.bf16.msra.mxu0 0
      %927 = vmatpush.bf16.msra.mxu0 0
      %928 = vmatpush.bf16.msra.mxu0 0
      %929 = vmatpush.bf16.msra.mxu0 0
      %930 = vmatpush.bf16.msra.mxu0 0
      %931 = vmatpush.bf16.msra.mxu0 %v911
      %932 = vmatmul.bf16.gmra.mxu0 %v922
      %v933 = vpop.f32.mrf.mxu0
      %v934 = vadd.f32 %v918, %v933
      %v935 = vpop.f32.mrf.mxu0
      %936 = vdwg.mxu0
      %937 = vmatpush.bf16.msra.mxu0 0
      %938 = vmatpush.bf16.msra.mxu0 0
      %939 = vmatpush.bf16.msra.mxu0 0
      %940 = vmatpush.bf16.msra.mxu0 0
      %941 = vmatpush.bf16.msra.mxu0 0
      %942 = vmatpush.bf16.msra.mxu0 0
      %943 = vmatpush.bf16.msra.mxu0 0
      %944 = vmatpush.bf16.msra.mxu0 %v912
      %945 = vmatmul.bf16.gmra.mxu0 %v922
      %v946 = vpop.f32.mrf.mxu0
      %v947 = vadd.f32 %v918, %v946
      %v948 = vpop.f32.mrf.mxu0
      %949 = vdwg.mxu0
      %950 = vst [vmem:[%s386] sm:$0xff] %v934
      %951 = vst [vmem:[%s386 + $0x8] sm:$0xff] %v947
      %p952 = scmp.lt.s32.totalorder %s22, 1
      %s953 = scalar_select %p952, %s22, 1
      %s954 = smul.addr %s953, 2
      %s955 = smul.addr %s954, 8
      %s956 = scalar_lea.vmem %s11, %s955
      // Predicated region
      $region65: #{patch_merging.1} parent=63 // pred_check
        %p957 = pneg %p276
      $region66: #{patch_merging.1} parent=63 // pred_check_branch
        %959 = sbr.rel (%p957) target = $region68
      $region67: #{patch_merging.1} parent=63 // pred_region
        _
      $region68: #{patch_merging.1} parent=63 // pred_fallthru
        _
    $region64: #{patch_merging.1} parent=5 // pred_fallthru
      _
    %p960 = scmp.le.s32.totalorder 2, %s17
    // Predicated region
    $region69: #{patch_merging.1} parent=5 // pred_check
      %p961 = pneg %p960
    $region70: #{patch_merging.1} parent=5 // pred_check_branch
      %963 = sbr.rel (%p961) target = $region72
    $region71: #{patch_merging.1} parent=5 // pred_region
      %s964 = ssub.s32 %s17, 2
      // Predicated region
      $region73: #{patch_merging.1} parent=71 // pred_check
        %p965 = pneg %p282
      $region74: #{patch_merging.1} parent=71 // pred_check_branch
        %967 = sbr.rel (%p965) target = $region76
      $region75: #{patch_merging.1} parent=71 // pred_region
        %p968 = scmp.lt.s32.totalorder %s23, 1
        %s969 = scalar_select %p968, %s23, 1
        %s970 = smul.addr %s969, 2
        %s971 = smul.addr %s970, 8
        %s972 = scalar_lea.vmem %s11, %s971
      $region76: #{patch_merging.1} parent=71 // pred_fallthru
        _
    $region72: #{patch_merging.1} parent=5 // pred_fallthru
      _
  $region6: #{patch_merging.1} parent=0 // loop_footer
    %s21 = sadd.s32 1, %s17
  $region7: #{patch_merging.1} parent=0 // loop_footer_branch
    %16 = sbr.rel target = $region3
  $region8: #{patch_merging.1} parent=0 // loop_exit
    _

</llo_original>
